<compile_context>
chip_gen: v6e
topology: v6e:2x2x1
jax: 0.10.0
libtpu: 0.0.40
codegen_flags: <defaults>
</compile_context>

<pallas_src>
import functools
import math

import jax
import jax.numpy as jnp
from jax.experimental import pallas as pl
from jax.experimental.pallas import tpu as pltpu

MASK_VALUE = -2.3e38            # large-negative mask bias; exp() underflows to 0
_VMEM_LIMIT = 48 * 1024 * 1024  # fits v7x (64 MiB) as well as v5e/v6e (128 MiB)


def _round_up(x, m):
    return (x + m - 1) // m * m


def _pad2d(a, rows, cols):
    r, c = a.shape
    if r == rows and c == cols:
        return a
    return jnp.pad(a, ((0, rows - r), (0, cols - c)))


# --------------------------------------------------------------------------- #
# Tiled linear (matmul + bias) kernel
# --------------------------------------------------------------------------- #
def _linear_kernel(x_ref, w_ref, b_ref, o_ref, acc_ref):
    k = pl.program_id(2)

    @pl.when(k == 0)
    def _init():
        acc_ref[...] = jnp.zeros_like(acc_ref)

    acc_ref[...] += jnp.dot(x_ref[...], w_ref[...],
                            preferred_element_type=jnp.float32)

    @pl.when(k == pl.num_programs(2) - 1)
    def _finalize():
        o_ref[...] = (acc_ref[...] +
                      b_ref[...].astype(jnp.float32)).astype(o_ref.dtype)


def pallas_linear(x_MK, w_KN, b_N, *, out_dtype=None,
                  tile_m=128, tile_n=256, tile_k=512):
    """y = x @ w + b with a tiled Pallas TPU matmul (f32 accumulation)."""
    M, K = x_MK.shape
    K2, N = w_KN.shape
    assert K == K2
    out_dtype = out_dtype or x_MK.dtype

    # Hardware-friendly tiles; pad M/N/K so every block is (8,128)-legal.
    tm = tile_m if M >= tile_m else _round_up(M, 8)
    tn = tile_n if N >= tile_n else _round_up(N, 128)
    tk = tile_k if K >= tile_k else _round_up(K, 128)
    Mp, Np, Kp = _round_up(M, tm), _round_up(N, tn), _round_up(K, tk)

    xp = _pad2d(x_MK, Mp, Kp)
    wp = _pad2d(w_KN, Kp, Np)
    bp = _pad2d(b_N.reshape(1, N), 1, Np)

    flops = 2 * M * K * N
    bytes_accessed = (x_MK.size * x_MK.dtype.itemsize
                      + w_KN.size * w_KN.dtype.itemsize
                      + b_N.size * b_N.dtype.itemsize
                      + M * N * jnp.dtype(out_dtype).itemsize)

    out = pl.pallas_call(
        _linear_kernel,
        out_shape=jax.ShapeDtypeStruct((Mp, Np), out_dtype),
        grid=(Mp // tm, Np // tn, Kp // tk),
        in_specs=[
            pl.BlockSpec((tm, tk), lambda i, j, k: (i, k)),   # activations
            pl.BlockSpec((tk, tn), lambda i, j, k: (k, j)),   # weights (K tiled)
            pl.BlockSpec((1, tn), lambda i, j, k: (0, j)),    # bias
        ],
        out_specs=pl.BlockSpec((tm, tn), lambda i, j, k: (i, j)),
        scratch_shapes=[pltpu.VMEM((tm, tn), jnp.float32)],
        compiler_params=pltpu.CompilerParams(
            dimension_semantics=("parallel", "parallel", "arbitrary"),
            vmem_limit_bytes=_VMEM_LIMIT),
        cost_estimate=pl.CostEstimate(flops=flops, transcendentals=0,
                                      bytes_accessed=bytes_accessed),
    )(xp, wp, bp)
    return out[:M, :N]


# --------------------------------------------------------------------------- #
# Flash-attention kernel (masked, online softmax)
# --------------------------------------------------------------------------- #
def _flash_attn_kernel(q_ref, k_ref, v_ref, bias_ref, o_ref,
                       m_scr, l_scr, acc_scr, *, scale):
    ki = pl.program_id(2)

    @pl.when(ki == 0)
    def _init():
        m_scr[...] = jnp.full_like(m_scr, MASK_VALUE)
        l_scr[...] = jnp.zeros_like(l_scr)
        acc_scr[...] = jnp.zeros_like(acc_scr)

    q = q_ref[0]                                   # (tq, d)
    k = k_ref[0]                                   # (tk, d)
    s = jax.lax.dot_general(q, k, (((1,), (1,)), ((), ())),
                            preferred_element_type=jnp.float32)
    s = s * scale + bias_ref[...]                  # additive mask bias (0 / -big)

    m_prev = m_scr[...]
    m_new = jnp.maximum(m_prev, s.max(axis=-1, keepdims=True))
    alpha = jnp.exp(m_prev - m_new)
    p = jnp.exp(s - m_new)
    l_scr[...] = alpha * l_scr[...] + p.sum(axis=-1, keepdims=True)
    acc_scr[...] = alpha * acc_scr[...] + jnp.dot(
        p.astype(v_ref.dtype), v_ref[0], preferred_element_type=jnp.float32)
    m_scr[...] = m_new

    @pl.when(ki == pl.num_programs(2) - 1)
    def _finalize():
        o_ref[0] = (acc_scr[...] / l_scr[...]).astype(o_ref.dtype)


def pallas_mha(q_BHLd, k_BHSd, v_BHSd, mask_bias_LS, *, scale,
               out_dtype=None, tile_q=128, tile_k=128):
    """Masked multi-head attention: softmax(q k^T * scale + bias) v."""
    B, H, Lq, d = q_BHLd.shape
    S = k_BHSd.shape[2]
    BH = B * H
    out_dtype = out_dtype or q_BHLd.dtype

    tq = tile_q if Lq >= tile_q else _round_up(Lq, 8)
    tk = tile_k if S >= tile_k else _round_up(S, 8)
    Lqp, Sp = _round_up(Lq, tq), _round_up(S, tk)

    q = jnp.pad(q_BHLd.reshape(BH, Lq, d), ((0, 0), (0, Lqp - Lq), (0, 0)))
    k = jnp.pad(k_BHSd.reshape(BH, S, d), ((0, 0), (0, Sp - S), (0, 0)))
    v = jnp.pad(v_BHSd.reshape(BH, S, d), ((0, 0), (0, Sp - S), (0, 0)))
    bias = jnp.pad(mask_bias_LS.astype(jnp.float32),
                   ((0, Lqp - Lq), (0, Sp - S)), constant_values=MASK_VALUE)

    flops = 4 * BH * Lq * S * d
    bytes_accessed = ((q.size + k.size + v.size) * q.dtype.itemsize
                      + bias.size * 4
                      + BH * Lq * d * jnp.dtype(out_dtype).itemsize)

    out = pl.pallas_call(
        functools.partial(_flash_attn_kernel, scale=scale),
        out_shape=jax.ShapeDtypeStruct((BH, Lqp, d), out_dtype),
        grid=(BH, Lqp // tq, Sp // tk),
        in_specs=[
            pl.BlockSpec((1, tq, d), lambda bh, qi, ki: (bh, qi, 0)),
            pl.BlockSpec((1, tk, d), lambda bh, qi, ki: (bh, ki, 0)),
            pl.BlockSpec((1, tk, d), lambda bh, qi, ki: (bh, ki, 0)),
            pl.BlockSpec((tq, tk), lambda bh, qi, ki: (qi, ki)),
        ],
        out_specs=pl.BlockSpec((1, tq, d), lambda bh, qi, ki: (bh, qi, 0)),
        scratch_shapes=[pltpu.VMEM((tq, 1), jnp.float32),
                        pltpu.VMEM((tq, 1), jnp.float32),
                        pltpu.VMEM((tq, d), jnp.float32)],
        compiler_params=pltpu.CompilerParams(
            dimension_semantics=("parallel", "parallel", "arbitrary"),
            vmem_limit_bytes=_VMEM_LIMIT),
        cost_estimate=pl.CostEstimate(flops=flops, transcendentals=BH * Lq * S,
                                      bytes_accessed=bytes_accessed),
    )(q, k, v, bias)
    return out[:, :Lq, :].reshape(B, H, Lq, d)


# --------------------------------------------------------------------------- #
# Rotary embedding helpers (pure elementwise, shared by module and reference)
# --------------------------------------------------------------------------- #
def precompute_sin_cos_cache(dim, seq_len, base=10000):
    inv_freq = 1.0 / (base ** (jnp.arange(0, dim, 2, dtype=jnp.float32) / dim))
    t = jnp.arange(seq_len, dtype=jnp.float32)
    freqs = jnp.einsum("i,j->ij", t, inv_freq)
    emb = jnp.concatenate([freqs, freqs], axis=-1)
    return jnp.cos(emb)[None, None, :, :], jnp.sin(emb)[None, None, :, :]


def _rotate_half(x):
    half = x.shape[-1] // 2
    x1, x2 = x[..., :half], x[..., half:]
    return jnp.concatenate([-x2, x1], axis=-1)


def _apply_rotary_offset(q, k, cos, sin, offset):
    L = q.shape[2]
    cos = cos[:, :, offset:offset + L, :]
    sin = sin[:, :, offset:offset + L, :]
    return (q * cos + _rotate_half(q) * sin,
            k * cos + _rotate_half(k) * sin)


# --------------------------------------------------------------------------- #
# Module forward: DecoderAttentionRotaryKVCache
# --------------------------------------------------------------------------- #
def decoder_attention_rotary_kv_cache(x_BLD, freqs_cis, causal_mask, past_kv,
                                      params, *, num_heads, rotary_pct,
                                      compute_dtype=jnp.float32):
    w_qkv, b_qkv, w_dense, b_dense = params     # PyTorch (out,in) / (out,) layout
    B, L, D = x_BLD.shape
    H = num_heads
    d = D // H
    R = int(d * rotary_pct)
    scale = d ** -0.5
    cos, sin = freqs_cis
    in_dtype = x_BLD.dtype
    cd = compute_dtype

    has_past = past_kv is not None
    offset = past_kv[0].shape[2] if has_past else 0

    # --- fused QKV projection (Pallas matmul, f32 output for the RoPE math) ---
    x_MD = x_BLD.reshape(B * L, D).astype(cd)
    qkv = pallas_linear(x_MD, w_qkv.T.astype(cd), b_qkv, out_dtype=jnp.float32)
    qkv = qkv.reshape(B, L, H, 3 * d)
    q = qkv[..., :d].transpose(0, 2, 1, 3)              # (B,H,L,d)
    k = qkv[..., d:2 * d].transpose(0, 2, 1, 3)
    v = qkv[..., 2 * d:].transpose(0, 2, 1, 3)

    # --- rotary embedding on the first R channels, with position offset ---
    q_rot, k_rot = _apply_rotary_offset(q[..., :R], k[..., :R], cos, sin, offset)
    q = jnp.concatenate([q_rot, q[..., R:]], axis=-1)
    k = jnp.concatenate([k_rot, k[..., R:]], axis=-1)

    # --- KV cache concatenation (new cache is returned) ---
    if has_past:
        k = jnp.concatenate([past_kv[0].astype(k.dtype), k], axis=2)
        v = jnp.concatenate([past_kv[1].astype(v.dtype), v], axis=2)
    kv_cache = (k.astype(in_dtype), v.astype(in_dtype))

    # --- masked attention (Pallas flash kernel) ---
    S = k.shape[2]
    # causal_mask is assumed broadcastable over batch/heads, i.e. (1,1,L,S).
    mask = jnp.asarray(causal_mask).reshape(-1, L, S)[0]
    mask_bias = jnp.where(mask, 0.0, MASK_VALUE).astype(jnp.float32)
    attn = pallas_mha(q.astype(cd), k.astype(cd), v.astype(cd), mask_bias,
                      scale=scale, out_dtype=jnp.float32)

    # --- merge heads + output projection (Pallas matmul) ---
    attn_MD = attn.transpose(0, 2, 1, 3).reshape(B * L, D).astype(cd)
    out = pallas_linear(attn_MD, w_dense.T.astype(cd), b_dense,
                        out_dtype=in_dtype)
    return out.reshape(B, L, D), kv_cache


# --------------------------------------------------------------------------- #
# Pure-JAX reference (mirrors the PyTorch module, f32, HIGHEST precision)
# --------------------------------------------------------------------------- #
def reference_forward(x_BLD, freqs_cis, causal_mask, past_kv, params, *,
                      num_heads, rotary_pct):
    hi = jax.lax.Precision.HIGHEST
    w_qkv, b_qkv, w_dense, b_dense = params
    B, L, D = x_BLD.shape
    H = num_heads
    d = D // H
    R = int(d * rotary_pct)
    scale = d ** -0.5
    cos, sin = freqs_cis
    offset = past_kv[0].shape[2] if past_kv is not None else 0

    qkv = jnp.dot(x_BLD, w_qkv.T, precision=hi) + b_qkv
    qkv = qkv.reshape(B, L, H, 3 * d)
    q = qkv[..., :d].transpose(0, 2, 1, 3)
    k = qkv[..., d:2 * d].transpose(0, 2, 1, 3)
    v = qkv[..., 2 * d:].transpose(0, 2, 1, 3)
    q_rot, k_rot = _apply_rotary_offset(q[..., :R], k[..., :R], cos, sin, offset)
    q = jnp.concatenate([q_rot, q[..., R:]], axis=-1)
    k = jnp.concatenate([k_rot, k[..., R:]], axis=-1)
    if past_kv is not None:
        k = jnp.concatenate([past_kv[0], k], axis=2)
        v = jnp.concatenate([past_kv[1], v], axis=2)
    S = k.shape[2]
    scores = jnp.einsum("bhqd,bhkd->bhqk", q, k, precision=hi) * scale
    mask = jnp.broadcast_to(jnp.asarray(causal_mask), (B, H, L, S))
    scores = jnp.where(mask, scores, -jnp.inf)
    probs = jax.nn.softmax(scores, axis=-1)
    attn = jnp.einsum("bhqk,bhkd->bhqd", probs, v, precision=hi)
    attn = attn.transpose(0, 2, 1, 3).reshape(B, L, D)
    out = jnp.dot(attn, w_dense.T, precision=hi) + b_dense
    return out, (k, v)


if __name__ == "__main__":
    B, L_prefill, L_decode = 2, 8, 4
    H, D = 4, 32
    d = D // H                       # 8
    rotary_pct = 0.25                # rotary_ndims = 2
    max_seq = 32

    key = jax.random.PRNGKey(0)
    kx1, kx2, kw1, kb1, kw2, kb2 = jax.random.split(key, 6)
    x1 = jax.random.normal(kx1, (B, L_prefill, D), dtype=jnp.float32)
    x2 = jax.random.normal(kx2, (B, L_decode, D), dtype=jnp.float32)
    w_qkv = jax.random.normal(kw1, (3 * D, D), jnp.float32) / math.sqrt(D)
    b_qkv = jax.random.normal(kb1, (3 * D,), jnp.float32) * 0.02
    w_dense = jax.random.normal(kw2, (D, D), jnp.float32) / math.sqrt(D)
    b_dense = jax.random.normal(kb2, (D,), jnp.float32) * 0.02
    params = (w_qkv, b_qkv, w_dense, b_dense)

    R = int(d * rotary_pct)
    freqs_cis = precompute_sin_cos_cache(R, max_seq)

    # --- prefill: no past KV, standard causal mask -------------------------
    mask1 = jnp.tril(jnp.ones((L_prefill, L_prefill), dtype=bool))[None, None]
    out1, cache1 = decoder_attention_rotary_kv_cache(
        x1, freqs_cis, mask1, None, params, num_heads=H, rotary_pct=rotary_pct)
    out1 = jax.block_until_ready(out1)

    ref1, ref_cache1 = reference_forward(
        x1, freqs_cis, mask1, None, params, num_heads=H, rotary_pct=rotary_pct)
    assert jnp.allclose(out1, ref1, atol=1e-3, rtol=1e-3)
    assert jnp.allclose(cache1[0], ref_cache1[0], atol=1e-3, rtol=1e-3)
    assert jnp.allclose(cache1[1], ref_cache1[1], atol=1e-3, rtol=1e-3)

    # --- decode: past KV of length 8, new queries at positions 8..11 --------
    offset = L_prefill
    S = offset + L_decode
    qpos = offset + jnp.arange(L_decode)[:, None]
    kpos = jnp.arange(S)[None, :]
    mask2 = (kpos <= qpos)[None, None]
    out2, cache2 = decoder_attention_rotary_kv_cache(
        x2, freqs_cis, mask2, cache1, params, num_heads=H, rotary_pct=rotary_pct)
    out2 = jax.block_until_ready(out2)

    ref2, _ = reference_forward(
        x2, freqs_cis, mask2, ref_cache1, params, num_heads=H,
        rotary_pct=rotary_pct)
    assert jnp.allclose(out2, ref2, atol=1e-3, rtol=1e-3)

    # --- bf16 MXU compute path (the perf config for v6e/v7x): run + sanity --
    out_bf16, _ = decoder_attention_rotary_kv_cache(
        x1, freqs_cis, mask1, None, params, num_heads=H, rotary_pct=rotary_pct,
        compute_dtype=jnp.bfloat16)
    out_bf16 = jax.block_until_ready(out_bf16)
    assert bool(jnp.all(jnp.isfinite(out_bf16.astype(jnp.float32))))

    print("KERNEL_OK")
</pallas_src>

<mosaic_0001>
module attributes {stable_mosaic.version = 11 : i64} {
  func.func @_linear_kernel(%arg0: i32, %arg1: i32, %arg2: i32, %arg3: memref<16x128xf32, #tpu.memory_space<vmem>>, %arg4: memref<128x128xf32, #tpu.memory_space<vmem>>, %arg5: memref<1x128xf32, #tpu.memory_space<vmem>>, %arg6: memref<16x128xf32, #tpu.memory_space<vmem>>, %arg7: memref<16x128xf32, #tpu.memory_space<vmem>>) attributes {dimension_semantics = [#tpu.dimension_semantics<parallel>, #tpu.dimension_semantics<parallel>, #tpu.dimension_semantics<arbitrary>], iteration_bounds = array<i64: 1, 1, 1>, scalar_prefetch = 0 : i64, scratch_operands = 1 : i64, tpu.core_type = #tpu.core_type<tc>, window_params = [{transform_indices = @transform_0, window_bounds = array<i64: 16, 128>}, {transform_indices = @transform_1, window_bounds = array<i64: 128, 128>}, {transform_indices = @transform_2, window_bounds = array<i64: 1, 128>}, {transform_indices = @transform_3, window_bounds = array<i64: 16, 128>}]} {
    %c0_i32 = arith.constant 0 : i32
    %0 = arith.cmpi eq, %arg2, %c0_i32 : i32
    %1 = arith.extui %0 : i1 to i32
    %c0_i32_0 = arith.constant 0 : i32
    %2 = arith.cmpi ne, %1, %c0_i32_0 : i32
    scf.if %2 {
      %cst_10 = arith.constant 0.000000e+00 : f32
      %12 = vector.broadcast %cst_10 : f32 to vector<16x128xf32>
      %c0_11 = arith.constant 0 : index
      %c0_12 = arith.constant 0 : index
      %13 = vector.load %arg7[%c0_11, %c0_12] : memref<16x128xf32, #tpu.memory_space<vmem>>, vector<16x128xf32>
      tpu.vector_store %arg7[%c0_11, %c0_12], %12 {strides = array<i32>} : memref<16x128xf32, #tpu.memory_space<vmem>>, vector<16x128xf32>,
    } else {
    }
    %c0 = arith.constant 0 : index
    %c0_1 = arith.constant 0 : index
    %3 = vector.load %arg7[%c0, %c0_1] : memref<16x128xf32, #tpu.memory_space<vmem>>, vector<16x128xf32>
    %c0_2 = arith.constant 0 : index
    %c0_3 = arith.constant 0 : index
    %4 = vector.load %arg3[%c0_2, %c0_3] : memref<16x128xf32, #tpu.memory_space<vmem>>, vector<16x128xf32>
    %c0_4 = arith.constant 0 : index
    %c0_5 = arith.constant 0 : index
    %5 = vector.load %arg4[%c0_4, %c0_5] : memref<128x128xf32, #tpu.memory_space<vmem>>, vector<128x128xf32>
    %cst = arith.constant dense<0.000000e+00> : vector<16x128xf32>
    %6 = tpu.matmul %4, %5, %cst {dimension_numbers = #tpu.dot_dimension_numbers<[1], [0], [0], [1], [0, 0, 1, 1], [], []>} : vector<16x128xf32>, vector<128x128xf32>, vector<16x128xf32> -> vector<16x128xf32>
    %7 = arith.addf %3, %6 : vector<16x128xf32>
    %c0_6 = arith.constant 0 : index
    %c0_7 = arith.constant 0 : index
    %8 = vector.load %arg7[%c0_6, %c0_7] : memref<16x128xf32, #tpu.memory_space<vmem>>, vector<16x128xf32>
    tpu.vector_store %arg7[%c0_6, %c0_7], %7 {strides = array<i32>} : memref<16x128xf32, #tpu.memory_space<vmem>>, vector<16x128xf32>,
    %c0_i32_8 = arith.constant 0 : i32
    %9 = arith.cmpi eq, %arg2, %c0_i32_8 : i32
    %10 = arith.extui %9 : i1 to i32
    %c0_i32_9 = arith.constant 0 : i32
    %11 = arith.cmpi ne, %10, %c0_i32_9 : i32
    scf.if %11 {
      %c0_10 = arith.constant 0 : index
      %c0_11 = arith.constant 0 : index
      %12 = vector.load %arg7[%c0_10, %c0_11] : memref<16x128xf32, #tpu.memory_space<vmem>>, vector<16x128xf32>
      %c0_12 = arith.constant 0 : index
      %c0_13 = arith.constant 0 : index
      %13 = vector.load %arg5[%c0_12, %c0_13] : memref<1x128xf32, #tpu.memory_space<vmem>>, vector<1x128xf32>
      %14 = vector.broadcast %13 : vector<1x128xf32> to vector<16x128xf32>
      %15 = arith.addf %12, %14 : vector<16x128xf32>
      %c0_14 = arith.constant 0 : index
      %c0_15 = arith.constant 0 : index
      %16 = vector.load %arg6[%c0_14, %c0_15] : memref<16x128xf32, #tpu.memory_space<vmem>>, vector<16x128xf32>
      tpu.vector_store %arg6[%c0_14, %c0_15], %15 {strides = array<i32>} : memref<16x128xf32, #tpu.memory_space<vmem>>, vector<16x128xf32>,
    } else {
    }
    return
  }
  func.func @transform_0(%arg0: i32, %arg1: i32, %arg2: i32) -> (i32, i32) {
    %c0_i32 = arith.constant 0 : i32
    return %arg0, %arg2 : i32, i32
  }
  func.func @transform_1(%arg0: i32, %arg1: i32, %arg2: i32) -> (i32, i32) {
    %c0_i32 = arith.constant 0 : i32
    return %arg2, %arg1 : i32, i32
  }
  func.func @transform_2(%arg0: i32, %arg1: i32, %arg2: i32) -> (i32, i32) {
    %c0_i32 = arith.constant 0 : i32
    %c0_i32_0 = arith.constant 0 : i32
    return %c0_i32, %arg1 : i32, i32
  }
  func.func @transform_3(%arg0: i32, %arg1: i32, %arg2: i32) -> (i32, i32) {
    %c0_i32 = arith.constant 0 : i32
    return %arg0, %arg1 : i32, i32
  }
}

</mosaic_0001>

<llo_original>
// kernel: tpu_custom_call.1
$region0: #{tpu_custom_call.1}
  #allocation0 [shape = 'u32[]', space=smem, size = 0x4, offset = 0x4, fixed_abs, tag = 'smem constant byte address 0x4 - core index']
  #allocation1 [shape = 'u32[144,128]{1,0:T(1,128)}', space=vmem, size = 0x12000, scoped, tag = 'internal scratch']
  #allocation2 [shape = 'f32[16,128]{1,0:T(8,128)}', space=vmem, size = 0x2000, scoped, tag = 'scratch operand']
  %s0 = inlined_call_operand.hbm [shape: f32[16,128], index: 0, kind: input, shape index: {}]
  %s1 = inlined_call_operand.hbm [shape: f32[128,128], index: 1, kind: input, shape index: {}]
  %s2 = inlined_call_operand.vmem [shape: f32[1,128], index: 2, kind: input, shape index: {}]
  %s3 = inlined_call_operand.hbm [shape: f32[16,128], index: 3, kind: output, shape index: {}]
  %s4 = sld [smem:[#allocation0]]
  $region38: #{tpu_custom_call.1} parent=0
    _
  %s6 = ssub.s32 1, %s4
  %s7 = scalar_select 0, %s6, %s4
  $region1: #{tpu_custom_call.1} parent=0
    #allocation3 [shape = 'u8[8192]{0}', space=vmem, size = 0x2000, scoped, tag = 'input window, operand 0, single buffered']
    #allocation4 [shape = 's32[1]{0}', space=sflag, size = 0x4, scoped, tag = 'scoped memory for tpu_custom_call.1']
    #allocation5 [shape = 's32[1]{0}', space=sflag, size = 0x4, scoped, tag = 'scoped memory for tpu_custom_call.1']
    #allocation6 [shape = 'u8[65536]{0}', space=vmem, size = 0x10000, scoped, tag = 'input window, operand 1, single buffered']
    #allocation7 [shape = 's32[1]{0}', space=sflag, size = 0x4, scoped, tag = 'scoped memory for tpu_custom_call.1']
    #allocation8 [shape = 'u8[8192]{0}', space=vmem, size = 0x2000, scoped, tag = 'output window, operand 0, single buffered']
    %8 = vsyncpa [#allocation4], 0
    %9 = vsyncpa [#allocation7], 0
    %10 = vsyncpa [#allocation5], 0
    // Predicated region
    $region2: #{tpu_custom_call.1} parent=1 // pred_check
      _
    $region3: #{tpu_custom_call.1} parent=1 // pred_check_branch
      %12 = sbr.rel (0) target = $region5
    $region4: #{tpu_custom_call.1} parent=1 // pred_region
      %s14 = ssub.s32 256, 256
      %15 = vsyncadd [#allocation4], %s14
      %s16 = sshll.u32 [#allocation3], 4
      %s17 = int_to_ptr.vmem [resolvable:$true] %s16
      %22 = dma.hbm_to_vmem [thread:$0]  %s0, 256, %s17, [#allocation4], 128, 128, 8
    $region5: #{tpu_custom_call.1} parent=1 // pred_fallthru
      _
    // Predicated region
    $region6: #{tpu_custom_call.1} parent=1 // pred_check
      _
    $region7: #{tpu_custom_call.1} parent=1 // pred_check_branch
      %24 = sbr.rel (0) target = $region9
    $region8: #{tpu_custom_call.1} parent=1 // pred_region
      %s26 = ssub.s32 2048, 2048
      %27 = vsyncadd [#allocation7], %s26
      %s28 = sshll.u32 [#allocation6], 4
      %s29 = int_to_ptr.vmem [resolvable:$true] %s28
      %34 = dma.hbm_to_vmem [thread:$0]  %s1, 2048, %s29, [#allocation7], 128, 128, 8
    $region9: #{tpu_custom_call.1} parent=1 // pred_fallthru
      _
    // Predicated region
    $region10: #{tpu_custom_call.1} parent=1 // pred_check
      _
    $region11: #{tpu_custom_call.1} parent=1 // pred_check_branch
      %36 = sbr.rel (0) target = $region13
    $region12: #{tpu_custom_call.1} parent=1 // pred_region
      _
    $region13: #{tpu_custom_call.1} parent=1 // pred_fallthru
      _
    // Predicated region
    $region14: #{tpu_custom_call.1} parent=1 // pred_check
      _
    $region15: #{tpu_custom_call.1} parent=1 // pred_check_branch
      %38 = sbr.rel (0) target = $region17
    $region16: #{tpu_custom_call.1} parent=1 // pred_region
      %39 = dma.done [#allocation4], 256
    $region17: #{tpu_custom_call.1} parent=1 // pred_fallthru
      _
    // Predicated region
    $region18: #{tpu_custom_call.1} parent=1 // pred_check
      _
    $region19: #{tpu_custom_call.1} parent=1 // pred_check_branch
      %41 = sbr.rel (0) target = $region21
    $region20: #{tpu_custom_call.1} parent=1 // pred_region
      %42 = dma.done [#allocation7], 2048
    $region21: #{tpu_custom_call.1} parent=1 // pred_fallthru
      _
    %p43 = scmp.eq.s32.totalorder 0, 0
    // Predicated region
    $region22: #{tpu_custom_call.1} parent=1 // pred_check
      %p44 = pneg %p43
    $region23: #{tpu_custom_call.1} parent=1 // pred_check_branch
      %46 = sbr.rel (%p44) target = $region25
    $region24: #{tpu_custom_call.1} parent=1 // pred_region
      %47 = vst [vmem:[#allocation2] sm:$0xff] 0.0
      %48 = vst [vmem:[#allocation2 + $0x8] sm:$0xff] 0.0
    $region25: #{tpu_custom_call.1} parent=1 // pred_fallthru
      _
    %v49 = vld [vmem:[#allocation2] sm:$0xff]
    %v50 = vld [vmem:[#allocation2 + $0x8] sm:$0xff]
    %v51 = vld [vmem:[#allocation3] sm:$0xff]
    %v52 = vld [vmem:[#allocation3 + $0x8] sm:$0xff]
    %v53 = vld [vmem:[#allocation6] sm:$0xff]
    %v54 = vld [vmem:[#allocation6 + $0x8] sm:$0xff]
    %v55 = vld [vmem:[#allocation6 + $0x10] sm:$0xff]
    %v56 = vld [vmem:[#allocation6 + $0x18] sm:$0xff]
    %v57 = vld [vmem:[#allocation6 + $0x20] sm:$0xff]
    %v58 = vld [vmem:[#allocation6 + $0x28] sm:$0xff]
    %v59 = vld [vmem:[#allocation6 + $0x30] sm:$0xff]
    %v60 = vld [vmem:[#allocation6 + $0x38] sm:$0xff]
    %v61 = vld [vmem:[#allocation6 + $0x40] sm:$0xff]
    %v62 = vld [vmem:[#allocation6 + $0x48] sm:$0xff]
    %v63 = vld [vmem:[#allocation6 + $0x50] sm:$0xff]
    %v64 = vld [vmem:[#allocation6 + $0x58] sm:$0xff]
    %v65 = vld [vmem:[#allocation6 + $0x60] sm:$0xff]
    %v66 = vld [vmem:[#allocation6 + $0x68] sm:$0xff]
    %v67 = vld [vmem:[#allocation6 + $0x70] sm:$0xff]
    %v68 = vld [vmem:[#allocation6 + $0x78] sm:$0xff]
    %69 = vmatprep.subr.mxu0 0.0
    %70 = vmatpush1.msra.mxu0 %v68
    %71 = vmatprep.subr.mxu0 0.0
    %72 = vmatpush1.msra.mxu0 %v67
    %73 = vmatprep.subr.mxu0 0.0
    %74 = vmatpush1.msra.mxu0 %v66
    %75 = vmatprep.subr.mxu0 0.0
    %76 = vmatpush1.msra.mxu0 %v65
    %77 = vmatprep.subr.mxu0 0.0
    %78 = vmatpush1.msra.mxu0 %v64
    %79 = vmatprep.subr.mxu0 0.0
    %80 = vmatpush1.msra.mxu0 %v63
    %81 = vmatprep.subr.mxu0 0.0
    %82 = vmatpush1.msra.mxu0 %v62
    %83 = vmatprep.subr.mxu0 0.0
    %84 = vmatpush1.msra.mxu0 %v61
    %85 = vmatprep.subr.mxu0 0.0
    %86 = vmatpush1.msra.mxu0 %v60
    %87 = vmatprep.subr.mxu0 0.0
    %88 = vmatpush1.msra.mxu0 %v59
    %89 = vmatprep.subr.mxu0 0.0
    %90 = vmatpush1.msra.mxu0 %v58
    %91 = vmatprep.subr.mxu0 0.0
    %92 = vmatpush1.msra.mxu0 %v57
    %93 = vmatprep.subr.mxu0 0.0
    %94 = vmatpush1.msra.mxu0 %v56
    %95 = vmatprep.subr.mxu0 0.0
    %96 = vmatpush1.msra.mxu0 %v55
    %97 = vmatprep.subr.mxu0 0.0
    %98 = vmatpush1.msra.mxu0 %v54
    %99 = vmatprep.subr.mxu0 0.0
    %100 = vmatpush1.msra.mxu0 %v53
    %101 = vmatprep.subr.mxu0 0.0
    %102 = vmatpush2.msra.mxu0 0.0
    %103 = vmatprep.subr.mxu0 0.0
    %104 = vmatpush2.msra.mxu0 0.0
    %105 = vmatprep.subr.mxu0 0.0
    %106 = vmatpush2.msra.mxu0 0.0
    %107 = vmatprep.subr.mxu0 0.0
    %108 = vmatpush2.msra.mxu0 0.0
    %109 = vmatprep.subr.mxu0 0.0
    %110 = vmatpush2.msra.mxu0 0.0
    %111 = vmatprep.subr.mxu0 0.0
    %112 = vmatpush2.msra.mxu0 0.0
    %113 = vmatprep.subr.mxu0 0.0
    %114 = vmatpush2.msra.mxu0 0.0
    %115 = vmatprep.subr.mxu0 0.0
    %116 = vmatpush2.msra.mxu0 0.0
    %117 = vmatprep.subr.mxu0 0.0
    %118 = vmatpush2.msra.mxu0 0.0
    %119 = vmatprep.subr.mxu0 0.0
    %120 = vmatpush2.msra.mxu0 0.0
    %121 = vmatprep.subr.mxu0 0.0
    %122 = vmatpush2.msra.mxu0 0.0
    %123 = vmatprep.subr.mxu0 0.0
    %124 = vmatpush2.msra.mxu0 0.0
    %125 = vmatprep.subr.mxu0 0.0
    %126 = vmatpush2.msra.mxu0 0.0
    %127 = vmatprep.subr.mxu0 0.0
    %128 = vmatpush2.msra.mxu0 0.0
    %129 = vmatprep.subr.mxu0 0.0
    %130 = vmatpush2.msra.mxu0 0.0
    %131 = vmatprep.subr.mxu0 0.0
    %132 = vmatpush2.msra.mxu0 0.0
    %133 = vmatprep.mubr.f32.mxu0 0.0
    %134 = vmatmul.mubr.f32.gmra.mxu0 %v51
    %v135 = vpop.f32.mrf.mxu0
    %v136 = vadd.f32 0.0, %v135
    %v137 = vpop.f32.mrf.mxu0
    %138 = vmatprep.mubr.f32.mxu0 0.0
    %139 = vmatmul.mubr.f32.gmra.mxu0 %v52
    %v140 = vpop.f32.mrf.mxu0
    %v141 = vadd.f32 0.0, %v140
    %v142 = vpop.f32.mrf.mxu0
    %143 = vdwg.mxu0
    %v144 = vadd.f32 %v49, %v136
    %v145 = vadd.f32 %v50, %v141
    %146 = vst [vmem:[#allocation2] sm:$0xff] %v144
    %147 = vst [vmem:[#allocation2 + $0x8] sm:$0xff] %v145
    // Predicated region
    $region26: #{tpu_custom_call.1} parent=1 // pred_check
      %p148 = pneg %p43
    $region27: #{tpu_custom_call.1} parent=1 // pred_check_branch
      %150 = sbr.rel (%p148) target = $region29
    $region28: #{tpu_custom_call.1} parent=1 // pred_region
      %v151 = vld [vmem:[#allocation2] sm:$0xff]
      %v152 = vld [vmem:[#allocation2 + $0x8] sm:$0xff]
      %v153 = vld [vmem:[%s2] sm:$0x1]
      %v155 = vlaneseq
      %v156 = vshrl.u32 %v155, 7
      %v157 = vsub.s32 0, %v156
      %v158 = vrot.slane %v153, %v157
      %v160 = vadd.f32 %v151, %v158
      %v161 = vadd.f32 %v152, %v158
      %162 = vst [vmem:[#allocation8] sm:$0xff] %v160
      %163 = vst [vmem:[#allocation8 + $0x8] sm:$0xff] %v161
    $region29: #{tpu_custom_call.1} parent=1 // pred_fallthru
      _
    // Predicated region
    $region30: #{tpu_custom_call.1} parent=1 // pred_check
      _
    $region31: #{tpu_custom_call.1} parent=1 // pred_check_branch
      %165 = sbr.rel (0) target = $region33
    $region32: #{tpu_custom_call.1} parent=1 // pred_region
      %s167 = ssub.s32 256, 256
      %168 = vsyncadd [#allocation5], %s167
      %s169 = sshll.u32 [#allocation8], 4
      %s170 = int_to_ptr.vmem [resolvable:$true] %s169
      %175 = dma.vmem_to_hbm [thread:$0]  %s170, 256, %s3, [#allocation5], 128, 128, 8
    $region33: #{tpu_custom_call.1} parent=1 // pred_fallthru
      _
    // Predicated region
    $region34: #{tpu_custom_call.1} parent=1 // pred_check
      _
    $region35: #{tpu_custom_call.1} parent=1 // pred_check_branch
      %177 = sbr.rel (0) target = $region37
    $region36: #{tpu_custom_call.1} parent=1 // pred_region
      %178 = dma.done [#allocation5], 256
    $region37: #{tpu_custom_call.1} parent=1 // pred_fallthru
      _
    %179 = vsyncpa [#allocation4], 1
    %180 = vsyncpa [#allocation7], 1
    %181 = vsyncpa [#allocation5], 1

</llo_original>
